<compile_context>
chip_gen: v5e
topology: v5e:2x2
jax: 0.10.0
libtpu: 0.0.40
codegen_flags: <defaults>
</compile_context>

<pallas_src>
import functools

import jax
import jax.numpy as jnp
from jax.experimental import pallas as pl
from jax.experimental.pallas import tpu as pltpu


def se_kernel(x_ref, w1t_ref, b1_ref, w2t_ref, b2_ref, o_ref, *, inv_t):
    # x_ref: (BB, C, Tp)   w1t_ref: (C, bneck)   b1_ref: (1, bneck)
    # w2t_ref: (bneck, C)  b2_ref: (1, C)        o_ref: (BB, C, Tp)
    x = x_ref[...]                                        # native dtype slab
    bb, c, t = x.shape

    # Squeeze: global average pool over time as an MXU K-reduction with f32
    # accumulation (no full-slab .astype(f32) temp, frees VPU/XLU slots).
    ones_t = jnp.ones((t, 1), dtype=x.dtype)
    pooled = jnp.dot(x.reshape(bb * c, t), ones_t,
                     preferred_element_type=jnp.float32)              # (BB*C, 1)
    # inv_t uses the *unpadded* T, so zero-padded time columns are harmless.
    pooled = pooled.reshape(bb, c) * jnp.float32(inv_t)               # (BB, C)

    # Excitation: 1x1 convs == tiny matmuls (MXU, f32 accumulate).
    h = jnp.dot(pooled, w1t_ref[...],
                preferred_element_type=jnp.float32) + b1_ref[...]     # (BB, bneck)
    h = jnp.maximum(h, 0.0)                                           # ReLU
    s = jnp.dot(h, w2t_ref[...],
                preferred_element_type=jnp.float32) + b2_ref[...]     # (BB, C)
    s = jax.nn.sigmoid(s)

    # Scale: broadcast the gate over time; multiply & store in the native dtype.
    o_ref[...] = x * s.astype(o_ref.dtype)[:, :, None]


def _vmem_capacity_bytes():
    try:
        return int(pltpu.get_tpu_info().vmem_capacity_bytes)
    except Exception:
        return 64 * 1024 * 1024            # conservative fallback (v7x-sized)


def _num_tensorcores():
    # v7x exposes 2 TensorCores per chip; v5e/v6e have 1.  Best-effort detection;
    # defaulting to 1 only costs a (minor) balance heuristic, never correctness.
    try:
        dev = jax.devices()[0]
        for attr in ("num_cores", "core_count"):
            n = getattr(dev, attr, None)
            if n:
                return max(1, int(n))
    except Exception:
        pass
    return 1


def _choose_blocking(B, bytes_per_row, budget_bytes, num_cores):
    """Pick BB (batch rows per grid step).  Grid = cdiv(B, BB) with a partial
    last block, so prime/odd B never collapses to BB=1 tiny steps."""
    bb_cap = max(1, int(budget_bytes // max(1, bytes_per_row)))
    bb = min(B, bb_cap)
    if num_cores >= 2 and B >= 2:
        bb = min(bb, int(pl.cdiv(B, 2)))          # >= 2 steps for 2 TensorCores
        steps = int(pl.cdiv(B, bb))
        if steps % 2:                             # prefer an even step count
            cand = max(1, int(pl.cdiv(B, steps + 1)))
            if int(pl.cdiv(B, cand)) % 2 == 0:
                bb = cand
    return bb, int(pl.cdiv(B, bb))


def se_module(x, w1, b1, w2, b2):
    """x: (B, C, T); w1: (bneck, C); b1: (bneck,); w2: (C, bneck); b2: (C,)."""
    B, C, T = x.shape
    bneck = w1.shape[0]

    # Lane-dense stores: pad the time axis up to a multiple of 128 if needed.
    # Zero padding does not change the pooled sum, the mean divides by the true
    # T, and padded columns are sliced off the output.
    Tp = int(pl.cdiv(max(T, 1), 128)) * 128
    x_in = x if Tp == T else jnp.pad(x, ((0, 0), (0, 0), (0, Tp - T)))

    # Pre-transpose 1x1-conv weights so the kernel runs plain row-major matmuls.
    w1t = jnp.transpose(w1)                 # (C, bneck)
    w2t = jnp.transpose(w2)                 # (bneck, C)
    b1r = b1.reshape(1, bneck)
    b2r = b2.reshape(1, C)

    # ---- Per-generation VMEM budgeting --------------------------------------
    vmem_cap = _vmem_capacity_bytes()               # 128 MiB v5e/v6e, 64 MiB v7x
    vmem_limit = int(vmem_cap * 0.8)                # scoped limit (~102 / ~51 MiB)
    itemsize = x.dtype.itemsize
    p_item = w1t.dtype.itemsize
    # Fixed bytes: double-buffered params + headroom is taken off the budget.
    fixed_bytes = 2 * p_item * (2 * C * bneck + bneck + C)
    temp_bytes = 4 * (2 * C + bneck)                # f32 pooled/h/s per batch row
    # Per batch row: double-buffered input + output slabs (+ per-row f32 temps).
    bytes_per_row = 4 * C * Tp * itemsize + temp_bytes
    budget = int((vmem_limit - fixed_bytes) * 0.9)
    if budget < bytes_per_row:
        # TODO(synk): two-pass (pool-then-scale) T-tiled kernel for huge C*T.
        budget = bytes_per_row                      # falls back to BB = 1

    BB, steps = _choose_blocking(B, bytes_per_row, budget, _num_tensorcores())

    kernel = functools.partial(se_kernel, inv_t=1.0 / T)

    out = pl.pallas_call(
        kernel,
        out_shape=jax.ShapeDtypeStruct((B, C, Tp), x.dtype),
        grid_spec=pltpu.PrefetchScalarGridSpec(
            num_scalar_prefetch=0,
            grid=(steps,),
            in_specs=[
                pl.BlockSpec((BB, C, Tp), lambda b: (b, 0, 0)),   # x slab
                pl.BlockSpec((C, bneck), lambda b: (0, 0)),       # w1^T (resident)
                pl.BlockSpec((1, bneck), lambda b: (0, 0)),       # b1
                pl.BlockSpec((bneck, C), lambda b: (0, 0)),       # w2^T (resident)
                pl.BlockSpec((1, C), lambda b: (0, 0)),           # b2
            ],
            out_specs=pl.BlockSpec((BB, C, Tp), lambda b: (b, 0, 0)),
        ),
        compiler_params=pltpu.CompilerParams(
            dimension_semantics=("parallel",),
            vmem_limit_bytes=vmem_limit,
        ),
    )(x_in, w1t, b1r, w2t, b2r)

    return out if Tp == T else out[:, :, :T]


def se_module_ref(x, w1, b1, w2, b2):
    """Pure-JAX reference mirroring the PyTorch forward."""
    pooled = jnp.mean(x.astype(jnp.float32), axis=2)                 # (B, C)
    h = jnp.maximum(pooled @ w1.T + b1, 0.0)                         # (B, bneck)
    s = jax.nn.sigmoid(h @ w2.T + b2)                                # (B, C)
    return x * s[:, :, None].astype(x.dtype)


if __name__ == "__main__":
    # Small but lane-friendly shapes: T is a multiple of 128 so output stores
    # are unmasked (lane-dense) and no wrapper-side padding copy is needed.
    B, C, T = 4, 64, 256
    bottleneck = 32

    key = jax.random.PRNGKey(0)
    kx, k1, k2, k3, k4 = jax.random.split(key, 5)

    x = jax.random.normal(kx, (B, C, T), dtype=jnp.float32)
    # Deterministic synthetic parameters (Conv1d k=1 weights squeezed to 2-D).
    w1 = jax.random.normal(k1, (bottleneck, C), dtype=jnp.float32) * 0.1
    b1 = jax.random.normal(k2, (bottleneck,), dtype=jnp.float32) * 0.1
    w2 = jax.random.normal(k3, (C, bottleneck), dtype=jnp.float32) * 0.1
    b2 = jax.random.normal(k4, (C,), dtype=jnp.float32) * 0.1

    out = se_module(x, w1, b1, w2, b2)
    out = jax.block_until_ready(out)

    ref = se_module_ref(x, w1, b1, w2, b2)
    assert out.shape == (B, C, T)
    # Tolerance covers MXU bf16-pass rounding of f32 matmuls at DEFAULT precision.
    assert jnp.allclose(out, ref, atol=2e-3, rtol=2e-3), "mismatch vs reference"

    print("KERNEL_OK")
</pallas_src>

<mosaic_0001>
module attributes {stable_mosaic.version = 11 : i64} {
  func.func @se_kernel(%arg0: i32, %arg1: memref<4x64x256xf32, #tpu.memory_space<vmem>>, %arg2: memref<64x32xf32, #tpu.memory_space<vmem>>, %arg3: memref<1x32xf32, #tpu.memory_space<vmem>>, %arg4: memref<32x64xf32, #tpu.memory_space<vmem>>, %arg5: memref<1x64xf32, #tpu.memory_space<vmem>>, %arg6: memref<4x64x256xf32, #tpu.memory_space<vmem>>) attributes {dimension_semantics = [#tpu.dimension_semantics<parallel>], iteration_bounds = array<i64: 1>, scalar_prefetch = 0 : i64, scratch_operands = 0 : i64, tpu.core_type = #tpu.core_type<tc>, window_params = [{transform_indices = @transform_0, window_bounds = array<i64: 4, 64, 256>}, {pipeline_mode = #tpu.pipeline_mode<synchronous>, transform_indices = @transform_1, window_bounds = array<i64: 64, 32>}, {pipeline_mode = #tpu.pipeline_mode<synchronous>, transform_indices = @transform_2, window_bounds = array<i64: 1, 32>}, {pipeline_mode = #tpu.pipeline_mode<synchronous>, transform_indices = @transform_3, window_bounds = array<i64: 32, 64>}, {pipeline_mode = #tpu.pipeline_mode<synchronous>, transform_indices = @transform_4, window_bounds = array<i64: 1, 64>}, {transform_indices = @transform_5, window_bounds = array<i64: 4, 64, 256>}]} {
    %c0 = arith.constant 0 : index
    %c0_0 = arith.constant 0 : index
    %c0_1 = arith.constant 0 : index
    %0 = vector.load %arg1[%c0, %c0_0, %c0_1] : memref<4x64x256xf32, #tpu.memory_space<vmem>>, vector<4x64x256xf32>
    %cst = arith.constant 1.000000e+00 : f32
    %1 = vector.broadcast %cst : f32 to vector<256x1xf32>
    %2 = vector.shape_cast %0 : vector<4x64x256xf32> to vector<256x256xf32>
    %cst_2 = arith.constant dense<0.000000e+00> : vector<256x1xf32>
    %3 = tpu.matmul %2, %1, %cst_2 {dimension_numbers = #tpu.dot_dimension_numbers<[1], [0], [0], [1], [0, 0, 1, 1], [], []>} : vector<256x256xf32>, vector<256x1xf32>, vector<256x1xf32> -> vector<256x1xf32>
    %4 = vector.shape_cast %3 : vector<256x1xf32> to vector<4x64xf32>
    %cst_3 = arith.constant 3.906250e-03 : f32
    %5 = vector.broadcast %cst_3 : f32 to vector<4x64xf32>
    %6 = arith.mulf %4, %5 : vector<4x64xf32>
    %c0_4 = arith.constant 0 : index
    %c0_5 = arith.constant 0 : index
    %7 = vector.load %arg2[%c0_4, %c0_5] : memref<64x32xf32, #tpu.memory_space<vmem>>, vector<64x32xf32>
    %cst_6 = arith.constant dense<0.000000e+00> : vector<4x32xf32>
    %8 = tpu.matmul %6, %7, %cst_6 {dimension_numbers = #tpu.dot_dimension_numbers<[1], [0], [0], [1], [0, 0, 1, 1], [], []>} : vector<4x64xf32>, vector<64x32xf32>, vector<4x32xf32> -> vector<4x32xf32>
    %c0_7 = arith.constant 0 : index
    %c0_8 = arith.constant 0 : index
    %9 = vector.load %arg3[%c0_7, %c0_8] : memref<1x32xf32, #tpu.memory_space<vmem>>, vector<1x32xf32>
    %10 = vector.broadcast %9 : vector<1x32xf32> to vector<4x32xf32>
    %11 = arith.addf %8, %10 : vector<4x32xf32>
    %cst_9 = arith.constant 0.000000e+00 : f32
    %12 = vector.broadcast %cst_9 : f32 to vector<4x32xf32>
    %13 = arith.maximumf %11, %12 : vector<4x32xf32>
    %c0_10 = arith.constant 0 : index
    %c0_11 = arith.constant 0 : index
    %14 = vector.load %arg4[%c0_10, %c0_11] : memref<32x64xf32, #tpu.memory_space<vmem>>, vector<32x64xf32>
    %cst_12 = arith.constant dense<0.000000e+00> : vector<4x64xf32>
    %15 = tpu.matmul %13, %14, %cst_12 {dimension_numbers = #tpu.dot_dimension_numbers<[1], [0], [0], [1], [0, 0, 1, 1], [], []>} : vector<4x32xf32>, vector<32x64xf32>, vector<4x64xf32> -> vector<4x64xf32>
    %c0_13 = arith.constant 0 : index
    %c0_14 = arith.constant 0 : index
    %16 = vector.load %arg5[%c0_13, %c0_14] : memref<1x64xf32, #tpu.memory_space<vmem>>, vector<1x64xf32>
    %17 = vector.broadcast %16 : vector<1x64xf32> to vector<4x64xf32>
    %18 = arith.addf %15, %17 : vector<4x64xf32>
    %19 = arith.negf %18 : vector<4x64xf32>
    %20 = math.exp %19 : vector<4x64xf32>
    %cst_15 = arith.constant 1.000000e+00 : f32
    %21 = vector.broadcast %cst_15 : f32 to vector<4x64xf32>
    %22 = arith.addf %21, %20 : vector<4x64xf32>
    %23 = arith.divf %21, %22 : vector<4x64xf32>
    %24 = vector.shape_cast %23 : vector<4x64xf32> to vector<4x64x1xf32>
    %25 = vector.broadcast %24 : vector<4x64x1xf32> to vector<4x64x256xf32>
    %26 = arith.mulf %0, %25 : vector<4x64x256xf32>
    %c0_16 = arith.constant 0 : index
    %c0_17 = arith.constant 0 : index
    %c0_18 = arith.constant 0 : index
    %27 = vector.load %arg6[%c0_16, %c0_17, %c0_18] : memref<4x64x256xf32, #tpu.memory_space<vmem>>, vector<4x64x256xf32>
    tpu.vector_store %arg6[%c0_16, %c0_17, %c0_18], %26 {strides = array<i32>} : memref<4x64x256xf32, #tpu.memory_space<vmem>>, vector<4x64x256xf32>,
    return
  }
  func.func @transform_0(%arg0: i32) -> (i32, i32, i32) {
    %c0_i32 = arith.constant 0 : i32
    %c0_i32_0 = arith.constant 0 : i32
    %c0_i32_1 = arith.constant 0 : i32
    return %arg0, %c0_i32, %c0_i32_0 : i32, i32, i32
  }
  func.func @transform_1(%arg0: i32) -> (i32, i32) {
    %c0_i32 = arith.constant 0 : i32
    %c0_i32_0 = arith.constant 0 : i32
    %c0_i32_1 = arith.constant 0 : i32
    return %c0_i32, %c0_i32_0 : i32, i32
  }
  func.func @transform_2(%arg0: i32) -> (i32, i32) {
    %c0_i32 = arith.constant 0 : i32
    %c0_i32_0 = arith.constant 0 : i32
    %c0_i32_1 = arith.constant 0 : i32
    return %c0_i32, %c0_i32_0 : i32, i32
  }
  func.func @transform_3(%arg0: i32) -> (i32, i32) {
    %c0_i32 = arith.constant 0 : i32
    %c0_i32_0 = arith.constant 0 : i32
    %c0_i32_1 = arith.constant 0 : i32
    return %c0_i32, %c0_i32_0 : i32, i32
  }
  func.func @transform_4(%arg0: i32) -> (i32, i32) {
    %c0_i32 = arith.constant 0 : i32
    %c0_i32_0 = arith.constant 0 : i32
    %c0_i32_1 = arith.constant 0 : i32
    return %c0_i32, %c0_i32_0 : i32, i32
  }
  func.func @transform_5(%arg0: i32) -> (i32, i32, i32) {
    %c0_i32 = arith.constant 0 : i32
    %c0_i32_0 = arith.constant 0 : i32
    %c0_i32_1 = arith.constant 0 : i32
    return %arg0, %c0_i32, %c0_i32_0 : i32, i32, i32
  }
}

</mosaic_0001>

<llo_original>
// kernel: tpu_custom_call.1
$region0: #{tpu_custom_call.1}
  #allocation0 [shape = 'u32[]', space=smem, size = 0x4, offset = 0x4, fixed_abs, tag = 'smem constant byte address 0x4 - core index']
  #allocation1 [shape = 'u32[72,128]{1,0:T(1,128)}', space=vmem, size = 0x9000, scoped, tag = 'internal scratch']
  %s0 = inlined_call_operand.hbm [shape: f32[4,64,256], index: 0, kind: input, shape index: {}]
  %s1 = inlined_call_operand.vmem [shape: f32[64,32], index: 1, kind: input, shape index: {}]
  %s2 = inlined_call_operand.vmem [shape: f32[1,32], index: 2, kind: input, shape index: {}]
  %s3 = inlined_call_operand.vmem [shape: f32[32,64], index: 3, kind: input, shape index: {}]
  %s4 = inlined_call_operand.vmem [shape: f32[1,64], index: 4, kind: input, shape index: {}]
  %s5 = inlined_call_operand.hbm [shape: f32[4,64,256], index: 5, kind: output, shape index: {}]
  %s6 = sld [smem:[#allocation0]]
  $region34: #{tpu_custom_call.1} parent=0
    _
  %s8 = ssub.s32 1, %s6
  %s9 = scalar_select 0, %s8, %s6
  $region1: #{tpu_custom_call.1} parent=0
    #allocation2 [shape = 'u8[262144]{0}', space=vmem, size = 0x40000, scoped, tag = 'input window, operand 0, single buffered']
    #allocation3 [shape = 's32[1]{0}', space=sflag, size = 0x4, scoped, tag = 'scoped memory for tpu_custom_call.1']
    #allocation4 [shape = 's32[1]{0}', space=sflag, size = 0x4, scoped, tag = 'scoped memory for tpu_custom_call.1']
    #allocation5 [shape = 'u8[262144]{0}', space=vmem, size = 0x40000, scoped, tag = 'output window, operand 0, single buffered']
    %10 = vsyncpa [#allocation3], 0
    %11 = vsyncpa [#allocation4], 0
    // Predicated region
    $region2: #{tpu_custom_call.1} parent=1 // pred_check
      _
    $region3: #{tpu_custom_call.1} parent=1 // pred_check_branch
      %13 = sbr.rel (0) target = $region5
    $region4: #{tpu_custom_call.1} parent=1 // pred_region
      %15 = vsyncadd [#allocation3], 0
      %s16 = sshll.u32 %s0, 4
      %s17 = int_to_ptr.hbm [resolvable:$true] %s16
      %s18 = sshll.u32 [#allocation2], 4
      %s19 = int_to_ptr.vmem [resolvable:$true] %s18
      %24 = dma.hbm_to_vmem [thread:$0]  %s17, 8192, %s19, [#allocation3], 256, 256, 16
    $region5: #{tpu_custom_call.1} parent=1 // pred_fallthru
      _
    // Predicated region
    $region6: #{tpu_custom_call.1} parent=1 // pred_check
      _
    $region7: #{tpu_custom_call.1} parent=1 // pred_check_branch
      %26 = sbr.rel (0) target = $region9
    $region8: #{tpu_custom_call.1} parent=1 // pred_region
      _
    $region9: #{tpu_custom_call.1} parent=1 // pred_fallthru
      _
    // Predicated region
    $region10: #{tpu_custom_call.1} parent=1 // pred_check
      _
    $region11: #{tpu_custom_call.1} parent=1 // pred_check_branch
      %28 = sbr.rel (0) target = $region13
    $region12: #{tpu_custom_call.1} parent=1 // pred_region
      _
    $region13: #{tpu_custom_call.1} parent=1 // pred_fallthru
      _
    // Predicated region
    $region14: #{tpu_custom_call.1} parent=1 // pred_check
      _
    $region15: #{tpu_custom_call.1} parent=1 // pred_check_branch
      %30 = sbr.rel (0) target = $region17
    $region16: #{tpu_custom_call.1} parent=1 // pred_region
      _
    $region17: #{tpu_custom_call.1} parent=1 // pred_fallthru
      _
    // Predicated region
    $region18: #{tpu_custom_call.1} parent=1 // pred_check
      _
    $region19: #{tpu_custom_call.1} parent=1 // pred_check_branch
      %32 = sbr.rel (0) target = $region21
    $region20: #{tpu_custom_call.1} parent=1 // pred_region
      _
    $region21: #{tpu_custom_call.1} parent=1 // pred_fallthru
      _
    // Predicated region
    $region22: #{tpu_custom_call.1} parent=1 // pred_check
      _
    $region23: #{tpu_custom_call.1} parent=1 // pred_check_branch
      %34 = sbr.rel (0) target = $region25
    $region24: #{tpu_custom_call.1} parent=1 // pred_region
      %36 = dma.done [#allocation3], 8192
    $region25: #{tpu_custom_call.1} parent=1 // pred_fallthru
      _
    %v37 = vld [vmem:[#allocation2] sm:$0xff]
    %v38 = vld [vmem:[#allocation2 + $0x8] sm:$0xff]
    %v39 = vld [vmem:[#allocation2 + $0x10] sm:$0xff]
    %v40 = vld [vmem:[#allocation2 + $0x18] sm:$0xff]
    %v41 = vld [vmem:[#allocation2 + $0x20] sm:$0xff]
    %v42 = vld [vmem:[#allocation2 + $0x28] sm:$0xff]
    %v43 = vld [vmem:[#allocation2 + $0x30] sm:$0xff]
    %v44 = vld [vmem:[#allocation2 + $0x38] sm:$0xff]
    %v45 = vld [vmem:[#allocation2 + $0x40] sm:$0xff]
    %v46 = vld [vmem:[#allocation2 + $0x48] sm:$0xff]
    %v47 = vld [vmem:[#allocation2 + $0x50] sm:$0xff]
    %v48 = vld [vmem:[#allocation2 + $0x58] sm:$0xff]
    %v49 = vld [vmem:[#allocation2 + $0x60] sm:$0xff]
    %v50 = vld [vmem:[#allocation2 + $0x68] sm:$0xff]
    %v51 = vld [vmem:[#allocation2 + $0x70] sm:$0xff]
    %v52 = vld [vmem:[#allocation2 + $0x78] sm:$0xff]
    %v53 = vld [vmem:[#allocation2 + $0x80] sm:$0xff]
    %v54 = vld [vmem:[#allocation2 + $0x88] sm:$0xff]
    %v55 = vld [vmem:[#allocation2 + $0x90] sm:$0xff]
    %v56 = vld [vmem:[#allocation2 + $0x98] sm:$0xff]
    %v57 = vld [vmem:[#allocation2 + $0xa0] sm:$0xff]
    %v58 = vld [vmem:[#allocation2 + $0xa8] sm:$0xff]
    %v59 = vld [vmem:[#allocation2 + $0xb0] sm:$0xff]
    %v60 = vld [vmem:[#allocation2 + $0xb8] sm:$0xff]
    %v61 = vld [vmem:[#allocation2 + $0xc0] sm:$0xff]
    %v62 = vld [vmem:[#allocation2 + $0xc8] sm:$0xff]
    %v63 = vld [vmem:[#allocation2 + $0xd0] sm:$0xff]
    %v64 = vld [vmem:[#allocation2 + $0xd8] sm:$0xff]
    %v65 = vld [vmem:[#allocation2 + $0xe0] sm:$0xff]
    %v66 = vld [vmem:[#allocation2 + $0xe8] sm:$0xff]
    %v67 = vld [vmem:[#allocation2 + $0xf0] sm:$0xff]
    %v68 = vld [vmem:[#allocation2 + $0xf8] sm:$0xff]
    %v69 = vld [vmem:[#allocation2 + $0x100] sm:$0xff]
    %v70 = vld [vmem:[#allocation2 + $0x108] sm:$0xff]
    %v71 = vld [vmem:[#allocation2 + $0x110] sm:$0xff]
    %v72 = vld [vmem:[#allocation2 + $0x118] sm:$0xff]
    %v73 = vld [vmem:[#allocation2 + $0x120] sm:$0xff]
    %v74 = vld [vmem:[#allocation2 + $0x128] sm:$0xff]
    %v75 = vld [vmem:[#allocation2 + $0x130] sm:$0xff]
    %v76 = vld [vmem:[#allocation2 + $0x138] sm:$0xff]
    %v77 = vld [vmem:[#allocation2 + $0x140] sm:$0xff]
    %v78 = vld [vmem:[#allocation2 + $0x148] sm:$0xff]
    %v79 = vld [vmem:[#allocation2 + $0x150] sm:$0xff]
    %v80 = vld [vmem:[#allocation2 + $0x158] sm:$0xff]
    %v81 = vld [vmem:[#allocation2 + $0x160] sm:$0xff]
    %v82 = vld [vmem:[#allocation2 + $0x168] sm:$0xff]
    %v83 = vld [vmem:[#allocation2 + $0x170] sm:$0xff]
    %v84 = vld [vmem:[#allocation2 + $0x178] sm:$0xff]
    %v85 = vld [vmem:[#allocation2 + $0x180] sm:$0xff]
    %v86 = vld [vmem:[#allocation2 + $0x188] sm:$0xff]
    %v87 = vld [vmem:[#allocation2 + $0x190] sm:$0xff]
    %v88 = vld [vmem:[#allocation2 + $0x198] sm:$0xff]
    %v89 = vld [vmem:[#allocation2 + $0x1a0] sm:$0xff]
    %v90 = vld [vmem:[#allocation2 + $0x1a8] sm:$0xff]
    %v91 = vld [vmem:[#allocation2 + $0x1b0] sm:$0xff]
    %v92 = vld [vmem:[#allocation2 + $0x1b8] sm:$0xff]
    %v93 = vld [vmem:[#allocation2 + $0x1c0] sm:$0xff]
    %v94 = vld [vmem:[#allocation2 + $0x1c8] sm:$0xff]
    %v95 = vld [vmem:[#allocation2 + $0x1d0] sm:$0xff]
    %v96 = vld [vmem:[#allocation2 + $0x1d8] sm:$0xff]
    %v97 = vld [vmem:[#allocation2 + $0x1e0] sm:$0xff]
    %v98 = vld [vmem:[#allocation2 + $0x1e8] sm:$0xff]
    %v99 = vld [vmem:[#allocation2 + $0x1f0] sm:$0xff]
    %v100 = vld [vmem:[#allocation2 + $0x1f8] sm:$0xff]
    %101 = vmatpush.msra.mxu0 1.0
    %102 = vmatpush.msra.mxu0 1.0
    %103 = vmatpush.msra.mxu0 1.0
    %104 = vmatpush.msra.mxu0 1.0
    %105 = vmatpush.msra.mxu0 1.0
    %106 = vmatpush.msra.mxu0 1.0
    %107 = vmatpush.msra.mxu0 1.0
    %108 = vmatpush.msra.mxu0 1.0
    %109 = vmatpush.msra.mxu0 1.0
    %110 = vmatpush.msra.mxu0 1.0
    %111 = vmatpush.msra.mxu0 1.0
    %112 = vmatpush.msra.mxu0 1.0
    %113 = vmatpush.msra.mxu0 1.0
    %114 = vmatpush.msra.mxu0 1.0
    %115 = vmatpush.msra.mxu0 1.0
    %116 = vmatpush.msra.mxu0 1.0
    %117 = vmatmul.f32.gmra.mxu0 %v37
    %v118 = vpop.f32.mrf.mxu0
    %v119 = vadd.f32 0.0, %v118
    %120 = vmatmul.f32.gmra.mxu0 %v39
    %v121 = vpop.f32.mrf.mxu0
    %v122 = vadd.f32 0.0, %v121
    %123 = vmatmul.f32.gmra.mxu0 %v41
    %v124 = vpop.f32.mrf.mxu0
    %v125 = vadd.f32 0.0, %v124
    %126 = vmatmul.f32.gmra.mxu0 %v43
    %v127 = vpop.f32.mrf.mxu0
    %v128 = vadd.f32 0.0, %v127
    %129 = vmatmul.f32.gmra.mxu0 %v45
    %v130 = vpop.f32.mrf.mxu0
    %v131 = vadd.f32 0.0, %v130
    %132 = vmatmul.f32.gmra.mxu0 %v47
    %v133 = vpop.f32.mrf.mxu0
    %v134 = vadd.f32 0.0, %v133
    %135 = vmatmul.f32.gmra.mxu0 %v49
    %v136 = vpop.f32.mrf.mxu0
    %v137 = vadd.f32 0.0, %v136
    %138 = vmatmul.f32.gmra.mxu0 %v51
    %v139 = vpop.f32.mrf.mxu0
    %v140 = vadd.f32 0.0, %v139
    %141 = vmatmul.f32.gmra.mxu0 %v53
    %v142 = vpop.f32.mrf.mxu0
    %v143 = vadd.f32 0.0, %v142
    %144 = vmatmul.f32.gmra.mxu0 %v55
    %v145 = vpop.f32.mrf.mxu0
    %v146 = vadd.f32 0.0, %v145
    %147 = vmatmul.f32.gmra.mxu0 %v57
    %v148 = vpop.f32.mrf.mxu0
    %v149 = vadd.f32 0.0, %v148
    %150 = vmatmul.f32.gmra.mxu0 %v59
    %v151 = vpop.f32.mrf.mxu0
    %v152 = vadd.f32 0.0, %v151
    %153 = vmatmul.f32.gmra.mxu0 %v61
    %v154 = vpop.f32.mrf.mxu0
    %v155 = vadd.f32 0.0, %v154
    %156 = vmatmul.f32.gmra.mxu0 %v63
    %v157 = vpop.f32.mrf.mxu0
    %v158 = vadd.f32 0.0, %v157
    %159 = vmatmul.f32.gmra.mxu0 %v65
    %v160 = vpop.f32.mrf.mxu0
    %v161 = vadd.f32 0.0, %v160
    %162 = vmatmul.f32.gmra.mxu0 %v67
    %v163 = vpop.f32.mrf.mxu0
    %v164 = vadd.f32 0.0, %v163
    %165 = vmatmul.f32.gmra.mxu0 %v69
    %v166 = vpop.f32.mrf.mxu0
    %v167 = vadd.f32 0.0, %v166
    %168 = vmatmul.f32.gmra.mxu0 %v71
    %v169 = vpop.f32.mrf.mxu0
    %v170 = vadd.f32 0.0, %v169
    %171 = vmatmul.f32.gmra.mxu0 %v73
    %v172 = vpop.f32.mrf.mxu0
    %v173 = vadd.f32 0.0, %v172
    %174 = vmatmul.f32.gmra.mxu0 %v75
    %v175 = vpop.f32.mrf.mxu0
    %v176 = vadd.f32 0.0, %v175
    %177 = vmatmul.f32.gmra.mxu0 %v77
    %v178 = vpop.f32.mrf.mxu0
    %v179 = vadd.f32 0.0, %v178
    %180 = vmatmul.f32.gmra.mxu0 %v79
    %v181 = vpop.f32.mrf.mxu0
    %v182 = vadd.f32 0.0, %v181
    %183 = vmatmul.f32.gmra.mxu0 %v81
    %v184 = vpop.f32.mrf.mxu0
    %v185 = vadd.f32 0.0, %v184
    %186 = vmatmul.f32.gmra.mxu0 %v83
    %v187 = vpop.f32.mrf.mxu0
    %v188 = vadd.f32 0.0, %v187
    %189 = vmatmul.f32.gmra.mxu0 %v85
    %v190 = vpop.f32.mrf.mxu0
    %v191 = vadd.f32 0.0, %v190
    %192 = vmatmul.f32.gmra.mxu0 %v87
    %v193 = vpop.f32.mrf.mxu0
    %v194 = vadd.f32 0.0, %v193
    %195 = vmatmul.f32.gmra.mxu0 %v89
    %v196 = vpop.f32.mrf.mxu0
    %v197 = vadd.f32 0.0, %v196
    %198 = vmatmul.f32.gmra.mxu0 %v91
    %v199 = vpop.f32.mrf.mxu0
    %v200 = vadd.f32 0.0, %v199
    %201 = vmatmul.f32.gmra.mxu0 %v93
    %v202 = vpop.f32.mrf.mxu0
    %v203 = vadd.f32 0.0, %v202
    %204 = vmatmul.f32.gmra.mxu0 %v95
    %v205 = vpop.f32.mrf.mxu0
    %v206 = vadd.f32 0.0, %v205
    %207 = vmatmul.f32.gmra.mxu0 %v97
    %v208 = vpop.f32.mrf.mxu0
    %v209 = vadd.f32 0.0, %v208
    %210 = vmatmul.f32.gmra.mxu0 %v99
    %v211 = vpop.f32.mrf.mxu0
    %v212 = vadd.f32 0.0, %v211
    %213 = vdwg.mxu0
    %214 = vmatpush.msra.mxu0 1.0
    %215 = vmatpush.msra.mxu0 1.0
    %216 = vmatpush.msra.mxu0 1.0
    %217 = vmatpush.msra.mxu0 1.0
    %218 = vmatpush.msra.mxu0 1.0
    %219 = vmatpush.msra.mxu0 1.0
    %220 = vmatpush.msra.mxu0 1.0
    %221 = vmatpush.msra.mxu0 1.0
    %222 = vmatpush.msra.mxu0 1.0
    %223 = vmatpush.msra.mxu0 1.0
    %224 = vmatpush.msra.mxu0 1.0
    %225 = vmatpush.msra.mxu0 1.0
    %226 = vmatpush.msra.mxu0 1.0
    %227 = vmatpush.msra.mxu0 1.0
    %228 = vmatpush.msra.mxu0 1.0
    %229 = vmatpush.msra.mxu0 1.0
    %230 = vmatmul.f32.gmra.mxu0 %v38
    %v231 = vpop.f32.mrf.mxu0
    %v232 = vadd.f32 %v119, %v231
    %233 = vmatmul.f32.gmra.mxu0 %v40
    %v234 = vpop.f32.mrf.mxu0
    %v235 = vadd.f32 %v122, %v234
    %236 = vmatmul.f32.gmra.mxu0 %v42
    %v237 = vpop.f32.mrf.mxu0
    %v238 = vadd.f32 %v125, %v237
    %239 = vmatmul.f32.gmra.mxu0 %v44
    %v240 = vpop.f32.mrf.mxu0
    %v241 = vadd.f32 %v128, %v240
    %242 = vmatmul.f32.gmra.mxu0 %v46
    %v243 = vpop.f32.mrf.mxu0
    %v244 = vadd.f32 %v131, %v243
    %245 = vmatmul.f32.gmra.mxu0 %v48
    %v246 = vpop.f32.mrf.mxu0
    %v247 = vadd.f32 %v134, %v246
    %248 = vmatmul.f32.gmra.mxu0 %v50
    %v249 = vpop.f32.mrf.mxu0
    %v250 = vadd.f32 %v137, %v249
    %251 = vmatmul.f32.gmra.mxu0 %v52
    %v252 = vpop.f32.mrf.mxu0
    %v253 = vadd.f32 %v140, %v252
    %254 = vmatmul.f32.gmra.mxu0 %v54
    %v255 = vpop.f32.mrf.mxu0
    %v256 = vadd.f32 %v143, %v255
    %257 = vmatmul.f32.gmra.mxu0 %v56
    %v258 = vpop.f32.mrf.mxu0
    %v259 = vadd.f32 %v146, %v258
    %260 = vmatmul.f32.gmra.mxu0 %v58
    %v261 = vpop.f32.mrf.mxu0
    %v262 = vadd.f32 %v149, %v261
    %263 = vmatmul.f32.gmra.mxu0 %v60
    %v264 = vpop.f32.mrf.mxu0
    %v265 = vadd.f32 %v152, %v264
    %266 = vmatmul.f32.gmra.mxu0 %v62
    %v267 = vpop.f32.mrf.mxu0
    %v268 = vadd.f32 %v155, %v267
    %269 = vmatmul.f32.gmra.mxu0 %v64
    %v270 = vpop.f32.mrf.mxu0
    %v271 = vadd.f32 %v158, %v270
    %272 = vmatmul.f32.gmra.mxu0 %v66
    %v273 = vpop.f32.mrf.mxu0
    %v274 = vadd.f32 %v161, %v273
    %275 = vmatmul.f32.gmra.mxu0 %v68
    %v276 = vpop.f32.mrf.mxu0
    %v277 = vadd.f32 %v164, %v276
    %278 = vmatmul.f32.gmra.mxu0 %v70
    %v279 = vpop.f32.mrf.mxu0
    %v280 = vadd.f32 %v167, %v279
    %281 = vmatmul.f32.gmra.mxu0 %v72
    %v282 = vpop.f32.mrf.mxu0
    %v283 = vadd.f32 %v170, %v282
    %284 = vmatmul.f32.gmra.mxu0 %v74
    %v285 = vpop.f32.mrf.mxu0
    %v286 = vadd.f32 %v173, %v285
    %287 = vmatmul.f32.gmra.mxu0 %v76
    %v288 = vpop.f32.mrf.mxu0
    %v289 = vadd.f32 %v176, %v288
    %290 = vmatmul.f32.gmra.mxu0 %v78
    %v291 = vpop.f32.mrf.mxu0
    %v292 = vadd.f32 %v179, %v291
    %293 = vmatmul.f32.gmra.mxu0 %v80
    %v294 = vpop.f32.mrf.mxu0
    %v295 = vadd.f32 %v182, %v294
    %296 = vmatmul.f32.gmra.mxu0 %v82
    %v297 = vpop.f32.mrf.mxu0
    %v298 = vadd.f32 %v185, %v297
    %299 = vmatmul.f32.gmra.mxu0 %v84
    %v300 = vpop.f32.mrf.mxu0
    %v301 = vadd.f32 %v188, %v300
    %302 = vmatmul.f32.gmra.mxu0 %v86
    %v303 = vpop.f32.mrf.mxu0
    %v304 = vadd.f32 %v191, %v303
    %305 = vmatmul.f32.gmra.mxu0 %v88
    %v306 = vpop.f32.mrf.mxu0
    %v307 = vadd.f32 %v194, %v306
    %308 = vmatmul.f32.gmra.mxu0 %v90
    %v309 = vpop.f32.mrf.mxu0
    %v310 = vadd.f32 %v197, %v309
    %311 = vmatmul.f32.gmra.mxu0 %v92
    %v312 = vpop.f32.mrf.mxu0
    %v313 = vadd.f32 %v200, %v312
    %314 = vmatmul.f32.gmra.mxu0 %v94
    %v315 = vpop.f32.mrf.mxu0
    %v316 = vadd.f32 %v203, %v315
    %317 = vmatmul.f32.gmra.mxu0 %v96
    %v318 = vpop.f32.mrf.mxu0
    %v319 = vadd.f32 %v206, %v318
    %320 = vmatmul.f32.gmra.mxu0 %v98
    %v321 = vpop.f32.mrf.mxu0
    %v322 = vadd.f32 %v209, %v321
    %323 = vmatmul.f32.gmra.mxu0 %v100
    %v324 = vpop.f32.mrf.mxu0
    %v325 = vadd.f32 %v212, %v324
    %326 = vdwg.mxu0
    %v327 = vmul.f32 %v232, 0.00390625
    %v328 = vmul.f32 %v235, 0.00390625
    %v329 = vmul.f32 %v238, 0.00390625
    %v330 = vmul.f32 %v241, 0.00390625
    %v331 = vmul.f32 %v244, 0.00390625
    %v332 = vmul.f32 %v247, 0.00390625
    %v333 = vmul.f32 %v250, 0.00390625
    %v334 = vmul.f32 %v253, 0.00390625
    %v335 = vmul.f32 %v256, 0.00390625
    %v336 = vmul.f32 %v259, 0.00390625
    %v337 = vmul.f32 %v262, 0.00390625
    %v338 = vmul.f32 %v265, 0.00390625
    %v339 = vmul.f32 %v268, 0.00390625
    %v340 = vmul.f32 %v271, 0.00390625
    %v341 = vmul.f32 %v274, 0.00390625
    %v342 = vmul.f32 %v277, 0.00390625
    %v343 = vmul.f32 %v280, 0.00390625
    %v344 = vmul.f32 %v283, 0.00390625
    %v345 = vmul.f32 %v286, 0.00390625
    %v346 = vmul.f32 %v289, 0.00390625
    %v347 = vmul.f32 %v292, 0.00390625
    %v348 = vmul.f32 %v295, 0.00390625
    %v349 = vmul.f32 %v298, 0.00390625
    %v350 = vmul.f32 %v301, 0.00390625
    %v351 = vmul.f32 %v304, 0.00390625
    %v352 = vmul.f32 %v307, 0.00390625
    %v353 = vmul.f32 %v310, 0.00390625
    %v354 = vmul.f32 %v313, 0.00390625
    %v355 = vmul.f32 %v316, 0.00390625
    %v356 = vmul.f32 %v319, 0.00390625
    %v357 = vmul.f32 %v322, 0.00390625
    %v358 = vmul.f32 %v325, 0.00390625
    %v359 = vld [vmem:[%s1] sm:$0xff]
    %v360 = vld [vmem:[%s1 + $0x8] sm:$0xff]
    %v361 = vld [vmem:[%s1 + $0x10] sm:$0xff]
    %v362 = vld [vmem:[%s1 + $0x18] sm:$0xff]
    %v363 = vld [vmem:[%s1 + $0x20] sm:$0xff]
    %v364 = vld [vmem:[%s1 + $0x28] sm:$0xff]
    %v365 = vld [vmem:[%s1 + $0x30] sm:$0xff]
    %v366 = vld [vmem:[%s1 + $0x38] sm:$0xff]
    %v367 = vld [vmem:[%s2] sm:$0x1]
    %v369 = vperm.slane %v367, 0
    %403 = vset.pattern.permute.xlu0 0
    %404 = vperm.xlu0 %403, %v327
    %v405 = vpop.permute.xlu0 %404
    %406 = vset.pattern.permute.xlu0 0
    %407 = vperm.xlu0 %406, %v328
    %v408 = vpop.permute.xlu0 %407
    %409 = vset.pattern.permute.xlu0 0
    %410 = vperm.xlu0 %409, %v329
    %v411 = vpop.permute.xlu0 %410
    %412 = vset.pattern.permute.xlu0 0
    %413 = vperm.xlu0 %412, %v330
    %v414 = vpop.permute.xlu0 %413
    %415 = vset.pattern.permute.xlu0 0
    %416 = vperm.xlu0 %415, %v331
    %v417 = vpop.permute.xlu0 %416
    %418 = vset.pattern.permute.xlu0 0
    %419 = vperm.xlu0 %418, %v332
    %v420 = vpop.permute.xlu0 %419
    %421 = vset.pattern.permute.xlu0 0
    %422 = vperm.xlu0 %421, %v333
    %v423 = vpop.permute.xlu0 %422
    %424 = vset.pattern.permute.xlu0 0
    %425 = vperm.xlu0 %424, %v334
    %v426 = vpop.permute.xlu0 %425
    %427 = vset.pattern.permute.xlu0 0
    %428 = vperm.xlu0 %427, %v335
    %v429 = vpop.permute.xlu0 %428
    %430 = vset.pattern.permute.xlu0 0
    %431 = vperm.xlu0 %430, %v336
    %v432 = vpop.permute.xlu0 %431
    %433 = vset.pattern.permute.xlu0 0
    %434 = vperm.xlu0 %433, %v337
    %v435 = vpop.permute.xlu0 %434
    %436 = vset.pattern.permute.xlu0 0
    %437 = vperm.xlu0 %436, %v338
    %v438 = vpop.permute.xlu0 %437
    %439 = vset.pattern.permute.xlu0 0
    %440 = vperm.xlu0 %439, %v339
    %v441 = vpop.permute.xlu0 %440
    %442 = vset.pattern.permute.xlu0 0
    %443 = vperm.xlu0 %442, %v340
    %v444 = vpop.permute.xlu0 %443
    %445 = vset.pattern.permute.xlu0 0
    %446 = vperm.xlu0 %445, %v341
    %v447 = vpop.permute.xlu0 %446
    %448 = vset.pattern.permute.xlu0 0
    %449 = vperm.xlu0 %448, %v342
    %v450 = vpop.permute.xlu0 %449
    %451 = vset.pattern.permute.xlu0 0
    %452 = vperm.xlu0 %451, %v343
    %v453 = vpop.permute.xlu0 %452
    %454 = vset.pattern.permute.xlu0 0
    %455 = vperm.xlu0 %454, %v344
    %v456 = vpop.permute.xlu0 %455
    %457 = vset.pattern.permute.xlu0 0
    %458 = vperm.xlu0 %457, %v345
    %v459 = vpop.permute.xlu0 %458
    %460 = vset.pattern.permute.xlu0 0
    %461 = vperm.xlu0 %460, %v346
    %v462 = vpop.permute.xlu0 %461
    %463 = vset.pattern.permute.xlu0 0
    %464 = vperm.xlu0 %463, %v347
    %v465 = vpop.permute.xlu0 %464
    %466 = vset.pattern.permute.xlu0 0
    %467 = vperm.xlu0 %466, %v348
    %v468 = vpop.permute.xlu0 %467
    %469 = vset.pattern.permute.xlu0 0
    %470 = vperm.xlu0 %469, %v349
    %v471 = vpop.permute.xlu0 %470
    %472 = vset.pattern.permute.xlu0 0
    %473 = vperm.xlu0 %472, %v350
    %v474 = vpop.permute.xlu0 %473
    %475 = vset.pattern.permute.xlu0 0
    %476 = vperm.xlu0 %475, %v351
    %v477 = vpop.permute.xlu0 %476
    %478 = vset.pattern.permute.xlu0 0
    %479 = vperm.xlu0 %478, %v352
    %v480 = vpop.permute.xlu0 %479
    %481 = vset.pattern.permute.xlu0 0
    %482 = vperm.xlu0 %481, %v353
    %v483 = vpop.permute.xlu0 %482
    %484 = vset.pattern.permute.xlu0 0
    %485 = vperm.xlu0 %484, %v354
    %v486 = vpop.permute.xlu0 %485
    %487 = vset.pattern.permute.xlu0 0
    %488 = vperm.xlu0 %487, %v355
    %v489 = vpop.permute.xlu0 %488
    %490 = vset.pattern.permute.xlu0 0
    %491 = vperm.xlu0 %490, %v356
    %v492 = vpop.permute.xlu0 %491
    %493 = vset.pattern.permute.xlu0 0
    %494 = vperm.xlu0 %493, %v357
    %v495 = vpop.permute.xlu0 %494
    %496 = vset.pattern.permute.xlu0 0
    %497 = vperm.xlu0 %496, %v358
    %v498 = vpop.permute.xlu0 %497
    %v499 = vlaneseq
    %v500 = vand.u32 %v499, 127
    %v501 = vperm.slane %v405, %v500
    %v502 = vadd.s32 %v500, 4294967288
    %v503 = vperm.slane %v408, %v502
    %vm504 = vcmask 130112
    %v505 = vsel %vm504, %v503, %v501
    %v506 = vadd.s32 %v500, 4294967280
    %v507 = vperm.slane %v411, %v506
    %vm508 = vcmask 195712
    %v509 = vsel %vm508, %v507, %v505
    %v510 = vadd.s32 %v500, 4294967272
    %v511 = vperm.slane %v414, %v510
    %vm512 = vcmask 261312
    %v513 = vsel %vm512, %v511, %v509
    %v514 = vadd.s32 %v500, 4294967264
    %v515 = vperm.slane %v417, %v514
    %vm516 = vcmask 326912
    %v517 = vsel %vm516, %v515, %v513
    %v518 = vadd.s32 %v500, 4294967256
    %v519 = vperm.slane %v420, %v518
    %vm520 = vcmask 392512
    %v521 = vsel %vm520, %v519, %v517
    %v522 = vadd.s32 %v500, 4294967248
    %v523 = vperm.slane %v423, %v522
    %vm524 = vcmask 458112
    %v525 = vsel %vm524, %v523, %v521
    %v526 = vadd.s32 %v500, 4294967240
    %v527 = vperm.slane %v426, %v526
    %vm528 = vcmask 523712
    %v529 = vsel %vm528, %v527, %v525
    %v530 = vperm.slane %v429, %v500
    %v531 = vperm.slane %v432, %v502
    %v532 = vsel %vm504, %v531, %v530
    %v533 = vperm.slane %v435, %v506
    %v534 = vsel %vm508, %v533, %v532
    %v535 = vperm.slane %v438, %v510
    %v536 = vsel %vm512, %v535, %v534
    %v537 = vperm.slane %v441, %v514
    %v538 = vsel %vm516, %v537, %v536
    %v539 = vperm.slane %v444, %v518
    %v540 = vsel %vm520, %v539, %v538
    %v541 = vperm.slane %v447, %v522
    %v542 = vsel %vm524, %v541, %v540
    %v543 = vperm.slane %v450, %v526
    %v544 = vsel %vm528, %v543, %v542
    %v545 = vperm.slane %v453, %v500
    %v546 = vperm.slane %v456, %v502
    %v547 = vsel %vm504, %v546, %v545
    %v548 = vperm.slane %v459, %v506
    %v549 = vsel %vm508, %v548, %v547
    %v550 = vperm.slane %v462, %v510
    %v551 = vsel %vm512, %v550, %v549
    %v552 = vperm.slane %v465, %v514
    %v553 = vsel %vm516, %v552, %v551
    %v554 = vperm.slane %v468, %v518
    %v555 = vsel %vm520, %v554, %v553
    %v556 = vperm.slane %v471, %v522
    %v557 = vsel %vm524, %v556, %v555
    %v558 = vperm.slane %v474, %v526
    %v559 = vsel %vm528, %v558, %v557
    %v560 = vperm.slane %v477, %v500
    %v561 = vperm.slane %v480, %v502
    %v562 = vsel %vm504, %v561, %v560
    %v563 = vperm.slane %v483, %v506
    %v564 = vsel %vm508, %v563, %v562
    %v565 = vperm.slane %v486, %v510
    %v566 = vsel %vm512, %v565, %v564
    %v567 = vperm.slane %v489, %v514
    %v568 = vsel %vm516, %v567, %v566
    %v569 = vperm.slane %v492, %v518
    %v570 = vsel %vm520, %v569, %v568
    %v571 = vperm.slane %v495, %v522
    %v572 = vsel %vm524, %v571, %v570
    %v573 = vperm.slane %v498, %v526
    %v574 = vsel %vm528, %v573, %v572
    %vm575 = vcmask 1041409
    %v576 = vsel %vm575, %v544, %v529
    %vm577 = vcmask 1042434
    %v578 = vsel %vm577, %v559, %v576
    %vm579 = vcmask 1043459
    %v580 = vsel %vm579, %v574, %v578
    %vm581 = vcmask 523264
    %v582 = vsel %vm581, %v580, 0
    %584 = vmatpush.msra.mxu0 0.0
    %585 = vmatpush.msra.mxu0 0.0
    %586 = vmatpush.msra.mxu0 0.0
    %587 = vmatpush.msra.mxu0 0.0
    %588 = vmatpush.msra.mxu0 0.0
    %589 = vmatpush.msra.mxu0 0.0
    %590 = vmatpush.msra.mxu0 0.0
    %591 = vmatpush.msra.mxu0 0.0
    %592 = vmatpush.msra.mxu0 %v366
    %593 = vmatpush.msra.mxu0 %v365
    %594 = vmatpush.msra.mxu0 %v364
    %595 = vmatpush.msra.mxu0 %v363
    %596 = vmatpush.msra.mxu0 %v362
    %597 = vmatpush.msra.mxu0 %v361
    %598 = vmatpush.msra.mxu0 %v360
    %599 = vmatpush.msra.mxu0 %v359
    %600 = vmatmul.f32.gmra.mxu0 %v582
    %v601 = vpop.f32.mrf.mxu0
    %v602 = vadd.f32 %v369, %v601
    %603 = vdwg.mxu0
    %v604 = vmax.f32 %v602, 0.0
    %v605 = vld [vmem:[%s3] sm:$0xff]
    %v606 = vld [vmem:[%s3 + $0x8] sm:$0xff]
    %v607 = vld [vmem:[%s3 + $0x10] sm:$0xff]
    %v608 = vld [vmem:[%s3 + $0x18] sm:$0xff]
    %v609 = vld [vmem:[%s4] sm:$0x1]
    %v611 = vperm.slane %v609, 0
    %vm613 = vcmask 261120
    %v615 = vsel %vm613, %v604, 0
    %617 = vmatpush.msra.mxu0 0.0
    %618 = vmatpush.msra.mxu0 0.0
    %619 = vmatpush.msra.mxu0 0.0
    %620 = vmatpush.msra.mxu0 0.0
    %621 = vmatpush.msra.mxu0 0.0
    %622 = vmatpush.msra.mxu0 0.0
    %623 = vmatpush.msra.mxu0 0.0
    %624 = vmatpush.msra.mxu0 0.0
    %625 = vmatpush.msra.mxu0 0.0
    %626 = vmatpush.msra.mxu0 0.0
    %627 = vmatpush.msra.mxu0 0.0
    %628 = vmatpush.msra.mxu0 0.0
    %629 = vmatpush.msra.mxu0 %v608
    %630 = vmatpush.msra.mxu0 %v607
    %631 = vmatpush.msra.mxu0 %v606
    %632 = vmatpush.msra.mxu0 %v605
    %633 = vmatmul.f32.gmra.mxu0 %v615
    %v634 = vpop.f32.mrf.mxu0
    %v635 = vadd.f32 %v611, %v634
    %636 = vdwg.mxu0
    %v637 = vxor.u32 %v635, 2147483648
    %v638 = vmul.f32 %v637, 1.442695
    %v639 = vpow.pop %v638
    %v640 = vadd.f32 %v639, 1.0
    %v641 = vrcp.pop %v640
    %v642 = vmul.f32 %v640, %v641
    %v643 = vsub.f32 1.0, %v642
    %v644 = vmul.f32 %v641, %v643
    %v645 = vadd.f32 %v641, %v644
    %vm646 = vweird.f32 %v640
    %vm647 = vweird.f32 %v641
    %vm648 = vmor %vm646, %vm647
    %v649 = vsel %vm648, %v641, %v645
    %v650 = vand.u32 2147483647, %v640
    %vm651 = vcmp.eq.f32.partialorder %v650, 8.507059e+37
    %v652 = vand.u32 %v640, 2147483648
    %v653 = vor.u32 1.1754944e-38, %v652
    %v654 = vsel %vm651, %v653, %v649
    %v655 = vmul.f32 1.0, %v654
    %v656 = vperm.slane %v655, 0
    %v657 = vlaneseq
    %v658 = vshrl.u32 %v657, 7
    %660 = vset.pattern.permute.xlu0 %v658
    %661 = vperm.xlu0 %660, %v656
    %v662 = vpop.permute.xlu0 %661
    %v663 = vlaneseq
    %v664 = vshrl.u32 %v663, 7
    %v665 = vadd.s32 %v664, 8
    %666 = vset.pattern.permute.xlu0 %v665
    %667 = vperm.xlu0 %666, %v656
    %v668 = vpop.permute.xlu0 %667
    %v669 = vlaneseq
    %v670 = vshrl.u32 %v669, 7
    %v671 = vadd.s32 %v670, 16
    %672 = vset.pattern.permute.xlu0 %v671
    %673 = vperm.xlu0 %672, %v656
    %v674 = vpop.permute.xlu0 %673
    %v675 = vlaneseq
    %v676 = vshrl.u32 %v675, 7
    %v677 = vadd.s32 %v676, 24
    %678 = vset.pattern.permute.xlu0 %v677
    %679 = vperm.xlu0 %678, %v656
    %v680 = vpop.permute.xlu0 %679
    %v681 = vlaneseq
    %v682 = vshrl.u32 %v681, 7
    %v683 = vadd.s32 %v682, 32
    %684 = vset.pattern.permute.xlu0 %v683
    %685 = vperm.xlu0 %684, %v656
    %v686 = vpop.permute.xlu0 %685
    %v687 = vlaneseq
    %v688 = vshrl.u32 %v687, 7
    %v689 = vadd.s32 %v688, 40
    %690 = vset.pattern.permute.xlu0 %v689
    %691 = vperm.xlu0 %690, %v656
    %v692 = vpop.permute.xlu0 %691
    %v693 = vlaneseq
    %v694 = vshrl.u32 %v693, 7
    %v695 = vadd.s32 %v694, 48
    %696 = vset.pattern.permute.xlu0 %v695
    %697 = vperm.xlu0 %696, %v656
    %v698 = vpop.permute.xlu0 %697
    %v699 = vlaneseq
    %v700 = vshrl.u32 %v699, 7
    %v701 = vadd.s32 %v700, 56
    %702 = vset.pattern.permute.xlu0 %v701
    %703 = vperm.xlu0 %702, %v656
    %v704 = vpop.permute.xlu0 %703
    %v705 = vperm.slane %v655, 1
    %v706 = vlaneseq
    %v707 = vshrl.u32 %v706, 7
    %709 = vset.pattern.permute.xlu0 %v707
    %710 = vperm.xlu0 %709, %v705
    %v711 = vpop.permute.xlu0 %710
    %v712 = vlaneseq
    %v713 = vshrl.u32 %v712, 7
    %v714 = vadd.s32 %v713, 8
    %715 = vset.pattern.permute.xlu0 %v714
    %716 = vperm.xlu0 %715, %v705
    %v717 = vpop.permute.xlu0 %716
    %v718 = vlaneseq
    %v719 = vshrl.u32 %v718, 7
    %v720 = vadd.s32 %v719, 16
    %721 = vset.pattern.permute.xlu0 %v720
    %722 = vperm.xlu0 %721, %v705
    %v723 = vpop.permute.xlu0 %722
    %v724 = vlaneseq
    %v725 = vshrl.u32 %v724, 7
    %v726 = vadd.s32 %v725, 24
    %727 = vset.pattern.permute.xlu0 %v726
    %728 = vperm.xlu0 %727, %v705
    %v729 = vpop.permute.xlu0 %728
    %v730 = vlaneseq
    %v731 = vshrl.u32 %v730, 7
    %v732 = vadd.s32 %v731, 32
    %733 = vset.pattern.permute.xlu0 %v732
    %734 = vperm.xlu0 %733, %v705
    %v735 = vpop.permute.xlu0 %734
    %v736 = vlaneseq
    %v737 = vshrl.u32 %v736, 7
    %v738 = vadd.s32 %v737, 40
    %739 = vset.pattern.permute.xlu0 %v738
    %740 = vperm.xlu0 %739, %v705
    %v741 = vpop.permute.xlu0 %740
    %v742 = vlaneseq
    %v743 = vshrl.u32 %v742, 7
    %v744 = vadd.s32 %v743, 48
    %745 = vset.pattern.permute.xlu0 %v744
    %746 = vperm.xlu0 %745, %v705
    %v747 = vpop.permute.xlu0 %746
    %v748 = vlaneseq
    %v749 = vshrl.u32 %v748, 7
    %v750 = vadd.s32 %v749, 56
    %751 = vset.pattern.permute.xlu0 %v750
    %752 = vperm.xlu0 %751, %v705
    %v753 = vpop.permute.xlu0 %752
    %v754 = vperm.slane %v655, 2
    %v755 = vlaneseq
    %v756 = vshrl.u32 %v755, 7
    %758 = vset.pattern.permute.xlu0 %v756
    %759 = vperm.xlu0 %758, %v754
    %v760 = vpop.permute.xlu0 %759
    %v761 = vlaneseq
    %v762 = vshrl.u32 %v761, 7
    %v763 = vadd.s32 %v762, 8
    %764 = vset.pattern.permute.xlu0 %v763
    %765 = vperm.xlu0 %764, %v754
    %v766 = vpop.permute.xlu0 %765
    %v767 = vlaneseq
    %v768 = vshrl.u32 %v767, 7
    %v769 = vadd.s32 %v768, 16
    %770 = vset.pattern.permute.xlu0 %v769
    %771 = vperm.xlu0 %770, %v754
    %v772 = vpop.permute.xlu0 %771
    %v773 = vlaneseq
    %v774 = vshrl.u32 %v773, 7
    %v775 = vadd.s32 %v774, 24
    %776 = vset.pattern.permute.xlu0 %v775
    %777 = vperm.xlu0 %776, %v754
    %v778 = vpop.permute.xlu0 %777
    %v779 = vlaneseq
    %v780 = vshrl.u32 %v779, 7
    %v781 = vadd.s32 %v780, 32
    %782 = vset.pattern.permute.xlu0 %v781
    %783 = vperm.xlu0 %782, %v754
    %v784 = vpop.permute.xlu0 %783
    %v785 = vlaneseq
    %v786 = vshrl.u32 %v785, 7
    %v787 = vadd.s32 %v786, 40
    %788 = vset.pattern.permute.xlu0 %v787
    %789 = vperm.xlu0 %788, %v754
    %v790 = vpop.permute.xlu0 %789
    %v791 = vlaneseq
    %v792 = vshrl.u32 %v791, 7
    %v793 = vadd.s32 %v792, 48
    %794 = vset.pattern.permute.xlu0 %v793
    %795 = vperm.xlu0 %794, %v754
    %v796 = vpop.permute.xlu0 %795
    %v797 = vlaneseq
    %v798 = vshrl.u32 %v797, 7
    %v799 = vadd.s32 %v798, 56
    %800 = vset.pattern.permute.xlu0 %v799
    %801 = vperm.xlu0 %800, %v754
    %v802 = vpop.permute.xlu0 %801
    %v803 = vperm.slane %v655, 3
    %v804 = vlaneseq
    %v805 = vshrl.u32 %v804, 7
    %807 = vset.pattern.permute.xlu0 %v805
    %808 = vperm.xlu0 %807, %v803
    %v809 = vpop.permute.xlu0 %808
    %v810 = vlaneseq
    %v811 = vshrl.u32 %v810, 7
    %v812 = vadd.s32 %v811, 8
    %813 = vset.pattern.permute.xlu0 %v812
    %814 = vperm.xlu0 %813, %v803
    %v815 = vpop.permute.xlu0 %814
    %v816 = vlaneseq
    %v817 = vshrl.u32 %v816, 7
    %v818 = vadd.s32 %v817, 16
    %819 = vset.pattern.permute.xlu0 %v818
    %820 = vperm.xlu0 %819, %v803
    %v821 = vpop.permute.xlu0 %820
    %v822 = vlaneseq
    %v823 = vshrl.u32 %v822, 7
    %v824 = vadd.s32 %v823, 24
    %825 = vset.pattern.permute.xlu0 %v824
    %826 = vperm.xlu0 %825, %v803
    %v827 = vpop.permute.xlu0 %826
    %v828 = vlaneseq
    %v829 = vshrl.u32 %v828, 7
    %v830 = vadd.s32 %v829, 32
    %831 = vset.pattern.permute.xlu0 %v830
    %832 = vperm.xlu0 %831, %v803
    %v833 = vpop.permute.xlu0 %832
    %v834 = vlaneseq
    %v835 = vshrl.u32 %v834, 7
    %v836 = vadd.s32 %v835, 40
    %837 = vset.pattern.permute.xlu0 %v836
    %838 = vperm.xlu0 %837, %v803
    %v839 = vpop.permute.xlu0 %838
    %v840 = vlaneseq
    %v841 = vshrl.u32 %v840, 7
    %v842 = vadd.s32 %v841, 48
    %843 = vset.pattern.permute.xlu0 %v842
    %844 = vperm.xlu0 %843, %v803
    %v845 = vpop.permute.xlu0 %844
    %v846 = vlaneseq
    %v847 = vshrl.u32 %v846, 7
    %v848 = vadd.s32 %v847, 56
    %849 = vset.pattern.permute.xlu0 %v848
    %850 = vperm.xlu0 %849, %v803
    %v851 = vpop.permute.xlu0 %850
    %v852 = vmul.f32 %v37, %v662
    %v853 = vmul.f32 %v38, %v662
    %v854 = vmul.f32 %v39, %v668
    %v855 = vmul.f32 %v40, %v668
    %v856 = vmul.f32 %v41, %v674
    %v857 = vmul.f32 %v42, %v674
    %v858 = vmul.f32 %v43, %v680
    %v859 = vmul.f32 %v44, %v680
    %v860 = vmul.f32 %v45, %v686
    %v861 = vmul.f32 %v46, %v686
    %v862 = vmul.f32 %v47, %v692
    %v863 = vmul.f32 %v48, %v692
    %v864 = vmul.f32 %v49, %v698
    %v865 = vmul.f32 %v50, %v698
    %v866 = vmul.f32 %v51, %v704
    %v867 = vmul.f32 %v52, %v704
    %v868 = vmul.f32 %v53, %v711
    %v869 = vmul.f32 %v54, %v711
    %v870 = vmul.f32 %v55, %v717
    %v871 = vmul.f32 %v56, %v717
    %v872 = vmul.f32 %v57, %v723
    %v873 = vmul.f32 %v58, %v723
    %v874 = vmul.f32 %v59, %v729
    %v875 = vmul.f32 %v60, %v729
    %v876 = vmul.f32 %v61, %v735
    %v877 = vmul.f32 %v62, %v735
    %v878 = vmul.f32 %v63, %v741
    %v879 = vmul.f32 %v64, %v741
    %v880 = vmul.f32 %v65, %v747
    %v881 = vmul.f32 %v66, %v747
    %v882 = vmul.f32 %v67, %v753
    %v883 = vmul.f32 %v68, %v753
    %v884 = vmul.f32 %v69, %v760
    %v885 = vmul.f32 %v70, %v760
    %v886 = vmul.f32 %v71, %v766
    %v887 = vmul.f32 %v72, %v766
    %v888 = vmul.f32 %v73, %v772
    %v889 = vmul.f32 %v74, %v772
    %v890 = vmul.f32 %v75, %v778
    %v891 = vmul.f32 %v76, %v778
    %v892 = vmul.f32 %v77, %v784
    %v893 = vmul.f32 %v78, %v784
    %v894 = vmul.f32 %v79, %v790
    %v895 = vmul.f32 %v80, %v790
    %v896 = vmul.f32 %v81, %v796
    %v897 = vmul.f32 %v82, %v796
    %v898 = vmul.f32 %v83, %v802
    %v899 = vmul.f32 %v84, %v802
    %v900 = vmul.f32 %v85, %v809
    %v901 = vmul.f32 %v86, %v809
    %v902 = vmul.f32 %v87, %v815
    %v903 = vmul.f32 %v88, %v815
    %v904 = vmul.f32 %v89, %v821
    %v905 = vmul.f32 %v90, %v821
    %v906 = vmul.f32 %v91, %v827
    %v907 = vmul.f32 %v92, %v827
    %v908 = vmul.f32 %v93, %v833
    %v909 = vmul.f32 %v94, %v833
    %v910 = vmul.f32 %v95, %v839
    %v911 = vmul.f32 %v96, %v839
    %v912 = vmul.f32 %v97, %v845
    %v913 = vmul.f32 %v98, %v845
    %v914 = vmul.f32 %v99, %v851
    %v915 = vmul.f32 %v100, %v851
    %916 = vst [vmem:[#allocation5] sm:$0xff] %v852
    %917 = vst [vmem:[#allocation5 + $0x8] sm:$0xff] %v853
    %918 = vst [vmem:[#allocation5 + $0x10] sm:$0xff] %v854
    %919 = vst [vmem:[#allocation5 + $0x18] sm:$0xff] %v855
    %920 = vst [vmem:[#allocation5 + $0x20] sm:$0xff] %v856
    %921 = vst [vmem:[#allocation5 + $0x28] sm:$0xff] %v857
    %922 = vst [vmem:[#allocation5 + $0x30] sm:$0xff] %v858
    %923 = vst [vmem:[#allocation5 + $0x38] sm:$0xff] %v859
    %924 = vst [vmem:[#allocation5 + $0x40] sm:$0xff] %v860
    %925 = vst [vmem:[#allocation5 + $0x48] sm:$0xff] %v861
    %926 = vst [vmem:[#allocation5 + $0x50] sm:$0xff] %v862
    %927 = vst [vmem:[#allocation5 + $0x58] sm:$0xff] %v863
    %928 = vst [vmem:[#allocation5 + $0x60] sm:$0xff] %v864
    %929 = vst [vmem:[#allocation5 + $0x68] sm:$0xff] %v865
    %930 = vst [vmem:[#allocation5 + $0x70] sm:$0xff] %v866
    %931 = vst [vmem:[#allocation5 + $0x78] sm:$0xff] %v867
    %932 = vst [vmem:[#allocation5 + $0x80] sm:$0xff] %v868
    %933 = vst [vmem:[#allocation5 + $0x88] sm:$0xff] %v869
    %934 = vst [vmem:[#allocation5 + $0x90] sm:$0xff] %v870
    %935 = vst [vmem:[#allocation5 + $0x98] sm:$0xff] %v871
    %936 = vst [vmem:[#allocation5 + $0xa0] sm:$0xff] %v872
    %937 = vst [vmem:[#allocation5 + $0xa8] sm:$0xff] %v873
    %938 = vst [vmem:[#allocation5 + $0xb0] sm:$0xff] %v874
    %939 = vst [vmem:[#allocation5 + $0xb8] sm:$0xff] %v875
    %940 = vst [vmem:[#allocation5 + $0xc0] sm:$0xff] %v876
    %941 = vst [vmem:[#allocation5 + $0xc8] sm:$0xff] %v877
    %942 = vst [vmem:[#allocation5 + $0xd0] sm:$0xff] %v878
    %943 = vst [vmem:[#allocation5 + $0xd8] sm:$0xff] %v879
    %944 = vst [vmem:[#allocation5 + $0xe0] sm:$0xff] %v880
    %945 = vst [vmem:[#allocation5 + $0xe8] sm:$0xff] %v881
    %946 = vst [vmem:[#allocation5 + $0xf0] sm:$0xff] %v882
    %947 = vst [vmem:[#allocation5 + $0xf8] sm:$0xff] %v883
    %948 = vst [vmem:[#allocation5 + $0x100] sm:$0xff] %v884
    %949 = vst [vmem:[#allocation5 + $0x108] sm:$0xff] %v885
    %950 = vst [vmem:[#allocation5 + $0x110] sm:$0xff] %v886
    %951 = vst [vmem:[#allocation5 + $0x118] sm:$0xff] %v887
    %952 = vst [vmem:[#allocation5 + $0x120] sm:$0xff] %v888
    %953 = vst [vmem:[#allocation5 + $0x128] sm:$0xff] %v889
    %954 = vst [vmem:[#allocation5 + $0x130] sm:$0xff] %v890
    %955 = vst [vmem:[#allocation5 + $0x138] sm:$0xff] %v891
    %956 = vst [vmem:[#allocation5 + $0x140] sm:$0xff] %v892
    %957 = vst [vmem:[#allocation5 + $0x148] sm:$0xff] %v893
    %958 = vst [vmem:[#allocation5 + $0x150] sm:$0xff] %v894
    %959 = vst [vmem:[#allocation5 + $0x158] sm:$0xff] %v895
    %960 = vst [vmem:[#allocation5 + $0x160] sm:$0xff] %v896
    %961 = vst [vmem:[#allocation5 + $0x168] sm:$0xff] %v897
    %962 = vst [vmem:[#allocation5 + $0x170] sm:$0xff] %v898
    %963 = vst [vmem:[#allocation5 + $0x178] sm:$0xff] %v899
    %964 = vst [vmem:[#allocation5 + $0x180] sm:$0xff] %v900
    %965 = vst [vmem:[#allocation5 + $0x188] sm:$0xff] %v901
    %966 = vst [vmem:[#allocation5 + $0x190] sm:$0xff] %v902
    %967 = vst [vmem:[#allocation5 + $0x198] sm:$0xff] %v903
    %968 = vst [vmem:[#allocation5 + $0x1a0] sm:$0xff] %v904
    %969 = vst [vmem:[#allocation5 + $0x1a8] sm:$0xff] %v905
    %970 = vst [vmem:[#allocation5 + $0x1b0] sm:$0xff] %v906
    %971 = vst [vmem:[#allocation5 + $0x1b8] sm:$0xff] %v907
    %972 = vst [vmem:[#allocation5 + $0x1c0] sm:$0xff] %v908
    %973 = vst [vmem:[#allocation5 + $0x1c8] sm:$0xff] %v909
    %974 = vst [vmem:[#allocation5 + $0x1d0] sm:$0xff] %v910
    %975 = vst [vmem:[#allocation5 + $0x1d8] sm:$0xff] %v911
    %976 = vst [vmem:[#allocation5 + $0x1e0] sm:$0xff] %v912
    %977 = vst [vmem:[#allocation5 + $0x1e8] sm:$0xff] %v913
    %978 = vst [vmem:[#allocation5 + $0x1f0] sm:$0xff] %v914
    %979 = vst [vmem:[#allocation5 + $0x1f8] sm:$0xff] %v915
    // Predicated region
    $region26: #{tpu_custom_call.1} parent=1 // pred_check
      _
    $region27: #{tpu_custom_call.1} parent=1 // pred_check_branch
      %981 = sbr.rel (0) target = $region29
    $region28: #{tpu_custom_call.1} parent=1 // pred_region
      %983 = vsyncadd [#allocation4], 0
      %s984 = sshll.u32 [#allocation5], 4
      %s985 = int_to_ptr.vmem [resolvable:$true] %s984
      %s986 = sshll.u32 %s5, 4
      %s987 = int_to_ptr.hbm [resolvable:$true] %s986
      %992 = dma.vmem_to_hbm [thread:$0]  %s985, 8192, %s987, [#allocation4], 256, 256, 16
    $region29: #{tpu_custom_call.1} parent=1 // pred_fallthru
      _
    // Predicated region
    $region30: #{tpu_custom_call.1} parent=1 // pred_check
      _
    $region31: #{tpu_custom_call.1} parent=1 // pred_check_branch
      %994 = sbr.rel (0) target = $region33
    $region32: #{tpu_custom_call.1} parent=1 // pred_region
      %996 = dma.done [#allocation4], 8192
    $region33: #{tpu_custom_call.1} parent=1 // pred_fallthru
      _
    %997 = vsyncpa [#allocation3], 1
    %998 = vsyncpa [#allocation4], 1

</llo_original>
